<compile_context>
chip_gen: v7x
topology: tpu7x:2x2x1
jax: 0.10.0
libtpu: 0.0.40
codegen_flags: <defaults>
</compile_context>

<pallas_src>
import functools
import math

import jax
import jax.numpy as jnp
from jax.experimental import pallas as pl
from jax.experimental.pallas import tpu as pltpu


_TARGET_TILE_BYTES = 2 * 1024 * 1024  # ~2 MiB per x/out tile (Pallas double-buffers each)


def make_positional_encoding(embedding_dims: int, sequence_length: int) -> jnp.ndarray:
    """Deterministic parameter setup: exactly mirrors the PyTorch __init__."""
    denominator_exponent = jnp.arange(0, embedding_dims, 2, dtype=jnp.float32) / embedding_dims
    denominator = jnp.exp(denominator_exponent * math.log(10000.0))              # (D/2,)
    pos_numerator = jnp.arange(0, sequence_length, dtype=jnp.float32)[:, None]   # (S, 1)
    angles = pos_numerator / denominator                                         # (S, D/2)
    pe = jnp.zeros((sequence_length, embedding_dims), dtype=jnp.float32)
    pe = pe.at[:, 0::2].set(jnp.sin(angles))
    pe = pe.at[:, 1::2].set(jnp.cos(angles))
    return pe[:, None, :]  # (sequence_length, 1, embedding_dims)


def _lane_tile(rows: jnp.ndarray, reps: int) -> jnp.ndarray:
    """Replicate `rows` (r, D) `reps` times along the lane (last) axis.

    Uses concat-doubling (last-axis concatenation is well supported in Mosaic)
    instead of a broadcast + minor-dim-merging reshape.
    """
    assert reps >= 1
    out = None
    piece = rows
    r = reps
    while r > 0:
        if r & 1:
            out = piece if out is None else jnp.concatenate([out, piece], axis=-1)
        r >>= 1
        if r:
            piece = jnp.concatenate([piece, piece], axis=-1)
    return out


def _pe_add_kernel(x_ref, pe_ref, o_ref, *, reps: int):
    # x_ref / o_ref: (tb, tr) lane-dense tiles of the (B, S*D) view.
    # pe_ref: (tb, D) per-batch PE rows (or (1, D) when sequence_length == 1).
    # Each batch's PE vector repeats every D lanes of the flattened (S*D) row;
    # when pe_ref has a single row it broadcasts over the batch (sublane) axis.
    o_ref[...] = x_ref[...] + _lane_tile(pe_ref[...], reps)


def _pick_tiles(B: int, S: int, D: int, itemsize: int):
    """Choose (tb, tr) for the (B, S*D) view: big, lane-aligned, VMEM-safe tiles."""
    row = S * D
    row_bytes = row * itemsize

    # Sequence (row) tile: tr = ts*D, a multiple of 128 lanes (or the full row).
    if row_bytes <= _TARGET_TILE_BYTES:
        tr = row
    else:
        ts_quantum = 128 // math.gcd(D, 128)   # smallest ts with (ts*D) % 128 == 0
        tr = row                               # fallback: full row
        best_ts = None
        for ts in range(ts_quantum, S + 1, ts_quantum):
            if S % ts == 0 and ts * D * itemsize <= _TARGET_TILE_BYTES:
                best_ts = ts
        if best_ts is not None:
            tr = best_ts * D

    # Batch tile: a sublane-aligned divisor of B (or B itself), as big as fits.
    sub_q = 8 * max(1, 4 // itemsize)          # 8 for f32, 16 for bf16, ...
    cands = sorted({d for d in range(sub_q, B + 1, sub_q) if B % d == 0} | {B})
    fitting = [c for c in cands if c * tr * itemsize <= _TARGET_TILE_BYTES]
    tb = fitting[-1] if fitting else cands[0]

    # Prefer >= 2 total grid steps so a v7x megacore can use both TensorCores.
    if (B // tb) * (row // tr) == 1:
        if tb % (2 * sub_q) == 0:
            tb //= 2
        elif tr % (2 * D) == 0 and (tr // 2) % 128 == 0:
            tr //= 2
    return tb, tr


def positional_encoder_forward(x: jnp.ndarray, positional_encoding: jnp.ndarray) -> jnp.ndarray:
    """x: (B, S, D).  positional_encoding: (sequence_length, 1, D).

    Reproduces `x + positional_encoding[:, :x.shape[1], :]` (pe axis-0
    broadcasts against batch, as in the PyTorch module).
    """
    B, S, D = x.shape
    pe3 = positional_encoding[:, :S, :]        # semantics-faithful (no-op) slice
    S_pe = pe3.shape[0]
    assert pe3.shape[1] == 1 and pe3.shape[2] == D
    assert S_pe == B or S_pe == 1, (
        "Broadcast requires batch == sequence_length (or sequence_length == 1), "
        "matching the PyTorch module's behavior.")

    itemsize = jnp.dtype(x.dtype).itemsize
    row = S * D
    tb, tr = _pick_tiles(B, S, D, itemsize)
    reps = tr // D
    grid = (B // tb, row // tr)

    x2 = x.reshape(B, row)                      # contiguous reshape: free, lane-dense view
    pe2 = pe3.reshape(S_pe, D).astype(x.dtype)  # (B, D) or (1, D) table of per-batch rows

    if S_pe == B:
        # Per-batch rows travel with the batch tile; block index is constant
        # across the seq axis, so Pallas skips the redundant re-DMAs.
        pe_spec = pl.BlockSpec((tb, D), lambda i, j: (i, 0))
        pe_tile_rows = tb
    else:  # S_pe == 1: single row, broadcast over batch via jnp broadcasting.
        pe_spec = pl.BlockSpec((1, D), lambda i, j: (0, 0))
        pe_tile_rows = 1

    kernel = functools.partial(_pe_add_kernel, reps=reps)

    # Explicit VMEM budget: double-buffered x/out tiles + pe tiles + in-kernel
    # lane-tile temporaries, with headroom.  Stays within physical VMEM on all
    # of v5e / v6e / v7x.
    tile_bytes = tb * tr * itemsize
    pe_bytes = pe_tile_rows * D * itemsize
    vmem_need = 4 * tile_bytes + 2 * pe_bytes + 2 * tile_bytes + (1 << 20)
    vmem_limit = int(min(max(vmem_need, 32 * 1024 * 1024), 64 * 1024 * 1024))

    out2 = pl.pallas_call(
        kernel,
        out_shape=jax.ShapeDtypeStruct((B, row), x.dtype),
        grid_spec=pltpu.PrefetchScalarGridSpec(
            num_scalar_prefetch=0,
            grid=grid,
            in_specs=[
                pl.BlockSpec((tb, tr), lambda i, j: (i, j)),    # x tile (lane-dense)
                pe_spec,                                        # per-batch PE rows
            ],
            out_specs=pl.BlockSpec((tb, tr), lambda i, j: (i, j)),
        ),
        compiler_params=pltpu.CompilerParams(
            dimension_semantics=("parallel", "parallel"),
            vmem_limit_bytes=vmem_limit,
        ),
        # NOTE: callers that discard x can pass input_output_aliases={0: 0} to
        # write the result in place and drop the separate HBM output allocation.
    )(x2, pe2)

    return out2.reshape(B, S, D)


if __name__ == "__main__":
    # Small shapes consistent with the module's forward.  The module's
    # broadcasting (pe shape (seq_len, 1, D)) requires batch == sequence_length,
    # so pick batch = sequence_length = 8.
    embedding_dims = 32
    sequence_length = 8
    batch = 8
    seq = 8

    pe = make_positional_encoding(embedding_dims, sequence_length)

    key = jax.random.PRNGKey(0)
    x = jax.random.normal(key, (batch, seq, embedding_dims), dtype=jnp.float32)

    out = positional_encoder_forward(x, pe)
    out = jax.block_until_ready(out)

    # Reference check in plain JAX (same broadcasting as torch).
    ref = x + pe[:, :seq, :]
    assert out.shape == (batch, seq, embedding_dims)
    assert jnp.allclose(out, ref, atol=1e-6, rtol=1e-6)

    print("KERNEL_OK")
</pallas_src>

<mosaic_0001>
module attributes {stable_mosaic.version = 11 : i64} {
  func.func @_pe_add_kernel(%arg0: i32, %arg1: i32, %arg2: memref<8x128xf32, #tpu.memory_space<vmem>>, %arg3: memref<8x32xf32, #tpu.memory_space<vmem>>, %arg4: memref<8x128xf32, #tpu.memory_space<vmem>>) attributes {dimension_semantics = [#tpu.dimension_semantics<parallel>, #tpu.dimension_semantics<parallel>], iteration_bounds = array<i64: 1, 2>, scalar_prefetch = 0 : i64, scratch_operands = 0 : i64, tpu.core_type = #tpu.core_type<tc>, window_params = [{transform_indices = @transform_0, window_bounds = array<i64: 8, 128>}, {transform_indices = @transform_1, window_bounds = array<i64: 8, 32>}, {transform_indices = @transform_2, window_bounds = array<i64: 8, 128>}]} {
    %c0 = arith.constant 0 : index
    %c0_0 = arith.constant 0 : index
    %0 = vector.load %arg2[%c0, %c0_0] : memref<8x128xf32, #tpu.memory_space<vmem>>, vector<8x128xf32>
    %c0_1 = arith.constant 0 : index
    %c0_2 = arith.constant 0 : index
    %1 = vector.load %arg3[%c0_1, %c0_2] : memref<8x32xf32, #tpu.memory_space<vmem>>, vector<8x32xf32>
    %2 = tpu.concatenate %1, %1 in 1 : vector<8x32xf32>, vector<8x32xf32> -> vector<8x64xf32>
    %3 = tpu.concatenate %2, %2 in 1 : vector<8x64xf32>, vector<8x64xf32> -> vector<8x128xf32>
    %4 = arith.addf %0, %3 : vector<8x128xf32>
    %c0_3 = arith.constant 0 : index
    %c0_4 = arith.constant 0 : index
    %5 = vector.load %arg4[%c0_3, %c0_4] : memref<8x128xf32, #tpu.memory_space<vmem>>, vector<8x128xf32>
    tpu.vector_store %arg4[%c0_3, %c0_4], %4 {strides = array<i32>} : memref<8x128xf32, #tpu.memory_space<vmem>>, vector<8x128xf32>,
    return
  }
  func.func @transform_0(%arg0: i32, %arg1: i32) -> (i32, i32) {
    %c0_i32 = arith.constant 0 : i32
    return %arg0, %arg1 : i32, i32
  }
  func.func @transform_1(%arg0: i32, %arg1: i32) -> (i32, i32) {
    %c0_i32 = arith.constant 0 : i32
    %c0_i32_0 = arith.constant 0 : i32
    return %arg0, %c0_i32 : i32, i32
  }
  func.func @transform_2(%arg0: i32, %arg1: i32) -> (i32, i32) {
    %c0_i32 = arith.constant 0 : i32
    return %arg0, %arg1 : i32, i32
  }
}

</mosaic_0001>

<llo_original>
// kernel: tpu_custom_call.1
$region0: #{tpu_custom_call.1}
  #allocation0 [shape = 'u32[]', space=smem, size = 0x4, offset = 0x4, fixed_abs, tag = 'smem constant byte address 0x4 - core index']
  #allocation1 [shape = 'u32[144,128]{1,0:T(1,128)}', space=vmem, size = 0x12000, scoped, tag = 'internal scratch']
  %s0 = inlined_call_operand.hbm [shape: f32[8,256], index: 0, kind: input, shape index: {}]
  %s1 = inlined_call_operand.hbm [shape: f32[8,32], index: 1, kind: input, shape index: {}]
  %s2 = inlined_call_operand.hbm [shape: f32[8,256], index: 2, kind: output, shape index: {}]
  %s3 = sld [smem:[#allocation0]]
  $region49: #{tpu_custom_call.1} parent=0
    _
  %s5 = ssub.s32 1, %s3
  %s6 = scalar_select 0, %s5, %s3
  $region1: #{tpu_custom_call.1} parent=0
    #allocation2 [shape = 'u8[8192]{0}', space=vmem, size = 0x2000, scoped, tag = 'input window, operand 0']
    #allocation3 [shape = 's32[2]{0}', space=sflag, size = 0x8, scoped, tag = 'scoped memory for tpu_custom_call.1']
    #allocation4 [shape = 's32[2]{0}', space=sflag, size = 0x8, scoped, tag = 'scoped memory for tpu_custom_call.1']
    #allocation5 [shape = 'u8[4096]{0}', space=vmem, size = 0x1000, scoped, tag = 'input window, operand 1, single buffered']
    #allocation6 [shape = 's32[1]{0}', space=sflag, size = 0x4, scoped, tag = 'scoped memory for tpu_custom_call.1']
    #allocation7 [shape = 'u8[8192]{0}', space=vmem, size = 0x2000, scoped, tag = 'output window, operand 0']
    %7 = vsyncpa [#allocation3], 0
    %s8 = scalar_lea.sflag [#allocation3], 1
    %9 = vsyncpa %s8, 0
    %10 = vsyncpa [#allocation6], 0
    %11 = vsyncpa [#allocation4], 0
    %s12 = scalar_lea.sflag [#allocation4], 1
    %13 = vsyncpa %s12, 0
    loop: start=0, step=1, limit=4
    $region2: #{tpu_custom_call.1} parent=1 // loop_pre_header
      _
    $region3: #{tpu_custom_call.1} parent=1 // loop_header
      %s15 = sphi 0, %s19
      %p16 = scmp.ge.s32.totalorder %s15, 4
      %s22 = sphi 0, %s34
      %s23 = sphi 0, %s30
      %s24 = sphi 0, %s22
      %s25 = sphi 0, %s23
      %s26 = sphi 0, %s24
      %s27 = sphi 0, %s25
      %s39 = sphi 0, %s41
      %s42 = sphi 0, %s39
      %s43 = sphi 0, %s42
      %s59 = sphi 0, %s43
      %s65 = sphi 0, %s67
      %s68 = sphi 0, %s65
      %s69 = sphi 0, %s68
      %s85 = sphi 0, %s69
      %s93 = sphi 0, %s95
      %s96 = sphi 0, %s93
      %s97 = sphi 0, %s96
      %s113 = sphi 0, %s97
    $region4: #{tpu_custom_call.1} parent=1 // loop_header_branch
      %18 = sbr.rel (%p16) target = $region8
    $region5: #{tpu_custom_call.1} parent=1 // loop_body
      %s20 = ssub.s32 %s15, 1
      %s21 = ssub.s32 %s15, 2
      %s28 = sadd.s32 1, %s23
      %p29 = scmp.ge.s32.totalorder %s28, 2
      %s30 = scalar_select %p29, 0, %s28
      %s31 = sadd.s32 1, %s22
      %s32 = scalar_select %p29, %s31, %s22
      %p33 = scmp.ge.s32.totalorder %s32, 1
      %s34 = scalar_select %p33, 0, %s32
      %s35 = ssub.s32 %s22, %s34
      %s36 = ssub.s32 %s23, %s30
      %s37 = sor.u32 %s35, %s36
      %p38 = scmp.eq.s32.totalorder %s37, 0
      %s40 = sadd.s32 %s39, 1
      %s41 = scalar_select %p38, %s39, %s40
      %p44 = pneg %p38
      %p45 = scmp.eq.s32.totalorder %s15, 1
      %p46 = por %p44, %p45
      %p47 = scmp.ne.s32.totalorder %s39, %s42
      %p48 = scmp.eq.s32.totalorder %s15, 0
      %p49 = por %p47, %p48
      %p50 = scmp.ne.s32.totalorder %s39, %s42
      %p51 = scmp.eq.s32.totalorder %s20, 1
      %p52 = por %p50, %p51
      %p53 = scmp.ne.s32.totalorder %s42, %s43
      %p54 = scmp.eq.s32.totalorder %s20, 0
      %p55 = por %p53, %p54
      %p56 = scmp.ne.s32.totalorder %s42, %s43
      %p57 = scmp.eq.s32.totalorder %s21, 1
      %p58 = por %p56, %p57
      %p60 = scmp.ne.s32.totalorder %s43, %s59
      %p61 = scmp.eq.s32.totalorder %s21, 0
      %p62 = por %p60, %p61
      %s63 = ssub.s32 %s22, %s34
      %p64 = scmp.eq.s32.totalorder %s63, 0
      %s66 = sadd.s32 %s65, 1
      %s67 = scalar_select %p64, %s65, %s66
      %p70 = pneg %p64
      %p71 = scmp.eq.s32.totalorder %s15, 1
      %p72 = por %p70, %p71
      %p73 = scmp.ne.s32.totalorder %s65, %s68
      %p74 = scmp.eq.s32.totalorder %s15, 0
      %p75 = por %p73, %p74
      %p76 = scmp.ne.s32.totalorder %s65, %s68
      %p77 = scmp.eq.s32.totalorder %s20, 1
      %p78 = por %p76, %p77
      %p79 = scmp.ne.s32.totalorder %s68, %s69
      %p80 = scmp.eq.s32.totalorder %s20, 0
      %p81 = por %p79, %p80
      %p82 = scmp.ne.s32.totalorder %s68, %s69
      %p83 = scmp.eq.s32.totalorder %s21, 1
      %p84 = por %p82, %p83
      %p86 = scmp.ne.s32.totalorder %s69, %s85
      %p87 = scmp.eq.s32.totalorder %s21, 0
      %p88 = por %p86, %p87
      %s89 = ssub.s32 %s22, %s34
      %s90 = ssub.s32 %s23, %s30
      %s91 = sor.u32 %s89, %s90
      %p92 = scmp.eq.s32.totalorder %s91, 0
      %s94 = sadd.s32 %s93, 1
      %s95 = scalar_select %p92, %s93, %s94
      %p98 = pneg %p92
      %p99 = scmp.eq.s32.totalorder %s15, 1
      %p100 = por %p98, %p99
      %p101 = scmp.ne.s32.totalorder %s93, %s96
      %p102 = scmp.eq.s32.totalorder %s15, 0
      %p103 = por %p101, %p102
      %p104 = scmp.ne.s32.totalorder %s93, %s96
      %p105 = scmp.eq.s32.totalorder %s20, 1
      %p106 = por %p104, %p105
      %p107 = scmp.ne.s32.totalorder %s96, %s97
      %p108 = scmp.eq.s32.totalorder %s20, 0
      %p109 = por %p107, %p108
      %p110 = scmp.ne.s32.totalorder %s96, %s97
      %p111 = scmp.eq.s32.totalorder %s21, 1
      %p112 = por %p110, %p111
      %p114 = scmp.ne.s32.totalorder %s97, %s113
      %p115 = scmp.eq.s32.totalorder %s21, 0
      %p116 = por %p114, %p115
      %p117 = scmp.le.s32.totalorder 1, %s15
      %p118 = scmp.lt.s32.totalorder %s15, 3
      %p119 = pnand %p117, %p118
      %p120 = pneg %p119
      // Predicated region
      $region9: #{tpu_custom_call.1} parent=5 // pred_check
        _
      $region10: #{tpu_custom_call.1} parent=5 // pred_check_branch
        %122 = sbr.rel (%p119) target = $region12
      $region11: #{tpu_custom_call.1} parent=5 // pred_region
        %s123 = ssub.s32 %s15, 1
        // Predicated region
        $region13: #{tpu_custom_call.1} parent=11 // pred_check
          %p124 = pneg %p81
        $region14: #{tpu_custom_call.1} parent=11 // pred_check_branch
          %126 = sbr.rel (%p124) target = $region16
        $region15: #{tpu_custom_call.1} parent=11 // pred_region
          %s128 = ssub.s32 128, 128
          %129 = vsyncadd [#allocation6], %s128
          %s130 = smul.addr %s24, 128
          %s131 = scalar_lea.hbm %s1, %s130
          %s133 = sshll.u32 [#allocation5], 4
          %s134 = int_to_ptr.vmem [resolvable:$true] %s133
          %136 = dma.hbm_to_vmem [thread:$0]  %s131, 128, %s134, [#allocation6]
        $region16: #{tpu_custom_call.1} parent=11 // pred_fallthru
          _
      $region12: #{tpu_custom_call.1} parent=5 // pred_fallthru
        _
      %p137 = scmp.lt.s32.totalorder %s15, 2
      // Predicated region
      $region17: #{tpu_custom_call.1} parent=5 // pred_check
        %p138 = pneg %p137
      $region18: #{tpu_custom_call.1} parent=5 // pred_check_branch
        %140 = sbr.rel (%p138) target = $region20
      $region19: #{tpu_custom_call.1} parent=5 // pred_region
        // Predicated region
        $region21: #{tpu_custom_call.1} parent=19 // pred_check
          %p141 = pneg %p49
        $region22: #{tpu_custom_call.1} parent=19 // pred_check_branch
          %143 = sbr.rel (%p141) target = $region24
        $region23: #{tpu_custom_call.1} parent=19 // pred_region
          %s144 = sand.u32 %s39, 1
          %s145 = scalar_lea.sflag [#allocation3], %s144
          %s146 = sand.u32 %s39, 1
          %s147 = smul.addr %s146, 8
          %s148 = scalar_lea.vmem [#allocation2], %s147
          %s150 = ssub.s32 128, 128
          %151 = vsyncadd %s145, %s150
          %s152 = smul.addr %s22, 2
          %s153 = sadd.s32 %s23, %s152
          %s154 = smul.addr %s153, 128
          %s155 = scalar_lea.hbm %s0, %s154
          %s157 = sshll.u32 %s148, 4
          %s158 = int_to_ptr.vmem [resolvable:$true] %s157
          %160 = dma.hbm_to_vmem [thread:$0]  %s155, 128, %s158, %s145
        $region24: #{tpu_custom_call.1} parent=19 // pred_fallthru
          _
      $region20: #{tpu_custom_call.1} parent=5 // pred_fallthru
        _
      %p161 = scmp.le.s32.totalorder 1, %s15
      %p162 = scmp.lt.s32.totalorder %s15, 3
      %p163 = pnand %p161, %p162
      %p164 = pneg %p163
      // Predicated region
      $region25: #{tpu_custom_call.1} parent=5 // pred_check
        _
      $region26: #{tpu_custom_call.1} parent=5 // pred_check_branch
        %166 = sbr.rel (%p163) target = $region28
      $region27: #{tpu_custom_call.1} parent=5 // pred_region
        %s167 = ssub.s32 %s15, 1
        %s168 = sand.u32 %s42, 1
        %s169 = scalar_lea.sflag [#allocation3], %s168
        %s170 = sand.u32 %s42, 1
        %s171 = smul.addr %s170, 8
        %s172 = scalar_lea.vmem [#allocation2], %s171
        // Predicated region
        $region29: #{tpu_custom_call.1} parent=27 // pred_check
          %p173 = pneg %p55
        $region30: #{tpu_custom_call.1} parent=27 // pred_check_branch
          %175 = sbr.rel (%p173) target = $region32
        $region31: #{tpu_custom_call.1} parent=27 // pred_region
          %176 = dma.done %s169, 128
        $region32: #{tpu_custom_call.1} parent=27 // pred_fallthru
          _
        // Predicated region
        $region33: #{tpu_custom_call.1} parent=27 // pred_check
          %p177 = pneg %p81
        $region34: #{tpu_custom_call.1} parent=27 // pred_check_branch
          %179 = sbr.rel (%p177) target = $region36
        $region35: #{tpu_custom_call.1} parent=27 // pred_region
          %180 = dma.done [#allocation6], 128
        $region36: #{tpu_custom_call.1} parent=27 // pred_fallthru
          _
        %s181 = sand.u32 %s42, 1
        %s182 = scalar_lea.sflag [#allocation3], %s181
        %s183 = sand.u32 %s42, 1
        %s184 = smul.addr %s183, 8
        %s185 = scalar_lea.vmem [#allocation2], %s184
        %p186 = pneg %p55
        %p187 = pneg %p52
        %p188 = pneg %p81
        %p189 = pneg %p78
        %p190 = pneg %p109
        %p191 = pneg %p106
        %s192 = sand.u32 %s96, 1
        %s193 = scalar_lea.sflag [#allocation4], %s192
        %s194 = sand.u32 %s96, 1
        %s195 = smul.addr %s194, 8
        %s196 = scalar_lea.vmem [#allocation7], %s195
        %v197 = vld [vmem:[%s172] sm:$0xff]
        %v198 = vld [vmem:[#allocation5] sm:$0xff]
        %200 = vrot.lane.b32.xlu0 %v198, 32
        %v201 = vpop.permute.xlu0 %200
        %vm203 = vcmask 261120
        %v204 = vsel %vm203, %v198, %v201
        %206 = vrot.lane.b32.xlu0 %v204, 64
        %v207 = vpop.permute.xlu0 %206
        %vm209 = vcmask 523264
        %v210 = vsel %vm209, %v204, %v207
        %v211 = vadd.f32 %v197, %v210
        %212 = vst [vmem:[%s196] sm:$0xff] %v211
        %s213 = sand.u32 %s96, 1
        %s214 = scalar_lea.sflag [#allocation4], %s213
        %s215 = sand.u32 %s96, 1
        %s216 = smul.addr %s215, 8
        %s217 = scalar_lea.vmem [#allocation7], %s216
        // Predicated region
        $region37: #{tpu_custom_call.1} parent=27 // pred_check
          %p218 = pneg %p106
        $region38: #{tpu_custom_call.1} parent=27 // pred_check_branch
          %220 = sbr.rel (%p218) target = $region40
        $region39: #{tpu_custom_call.1} parent=27 // pred_region
          %s222 = ssub.s32 128, 128
          %223 = vsyncadd %s214, %s222
          %s224 = smul.addr %s24, 2
          %s225 = sadd.s32 %s25, %s224
          %s226 = smul.addr %s225, 128
          %s227 = scalar_lea.hbm %s2, %s226
          %s229 = sshll.u32 %s217, 4
          %s230 = int_to_ptr.vmem [resolvable:$true] %s229
          %232 = dma.vmem_to_hbm [thread:$0]  %s230, 128, %s227, %s214
        $region40: #{tpu_custom_call.1} parent=27 // pred_fallthru
          _
      $region28: #{tpu_custom_call.1} parent=5 // pred_fallthru
        _
      %p233 = scmp.le.s32.totalorder 2, %s15
      // Predicated region
      $region41: #{tpu_custom_call.1} parent=5 // pred_check
        %p234 = pneg %p233
      $region42: #{tpu_custom_call.1} parent=5 // pred_check_branch
        %236 = sbr.rel (%p234) target = $region44
      $region43: #{tpu_custom_call.1} parent=5 // pred_region
        %s237 = ssub.s32 %s15, 2
        // Predicated region
        $region45: #{tpu_custom_call.1} parent=43 // pred_check
          %p238 = pneg %p112
        $region46: #{tpu_custom_call.1} parent=43 // pred_check_branch
          %240 = sbr.rel (%p238) target = $region48
        $region47: #{tpu_custom_call.1} parent=43 // pred_region
          %s241 = sand.u32 %s97, 1
          %s242 = scalar_lea.sflag [#allocation4], %s241
          %s243 = sand.u32 %s97, 1
          %s244 = smul.addr %s243, 8
          %s245 = scalar_lea.vmem [#allocation7], %s244
          %246 = dma.done %s242, 128
        $region48: #{tpu_custom_call.1} parent=43 // pred_fallthru
          _
      $region44: #{tpu_custom_call.1} parent=5 // pred_fallthru
        _
    $region6: #{tpu_custom_call.1} parent=1 // loop_footer
      %s19 = sadd.s32 1, %s15
    $region7: #{tpu_custom_call.1} parent=1 // loop_footer_branch
      %14 = sbr.rel target = $region3
    $region8: #{tpu_custom_call.1} parent=1 // loop_exit
      _
    %247 = vsyncpa [#allocation3], 1
    %s248 = scalar_lea.sflag [#allocation3], 1
    %249 = vsyncpa %s248, 1
    %250 = vsyncpa [#allocation6], 1
    %251 = vsyncpa [#allocation4], 1
    %s252 = scalar_lea.sflag [#allocation4], 1
    %253 = vsyncpa %s252, 1

</llo_original>
